<compile_context>
chip_gen: v7x
topology: tpu7x:2x2x1
jax: 0.10.0
libtpu: 0.0.40
codegen_flags: <defaults>
</compile_context>

<pallas_src>
import jax
import jax.numpy as jnp
from jax.experimental import pallas as pl
from jax.experimental.pallas import tpu as pltpu

LN_EPS = 1e-5  # F.layer_norm default eps


# ----------------------------- Pallas kernel --------------------------------
def _layernorm_kernel(x_ref, gamma_ref, beta_ref, o_ref):
    x = x_ref[...].astype(jnp.float32)                  # (TM, D)
    d = x.shape[-1]
    inv_d = jnp.float32(1.0 / d)
    # Two independent XLU reductions (can overlap in the reduction FIFO).
    s = jnp.sum(x, axis=-1, keepdims=True)              # sum(x)
    ss = jnp.sum(x * x, axis=-1, keepdims=True)         # sum(x^2)
    mu = s * inv_d
    var = ss * inv_d - mu * mu                          # E[x^2] - mu^2
    inv = jax.lax.rsqrt(var + LN_EPS)
    y = (x - mu) * inv * gamma_ref[...] + beta_ref[...]
    o_ref[...] = y.astype(o_ref.dtype)


# ----------------------------- wrapper ---------------------------------------
def _pick_block_rows(m, cap=256):
    """Largest row tile <= cap that divides m (multiple of 8), else full m."""
    if m <= cap:
        return m
    for tm in range(cap - cap % 8, 7, -8):
        if m % tm == 0:
            return tm
    return m  # fall back to a single full-extent block (always legal)


def layer_norm(x, gamma, beta=None, *, block_rows=None):
    """F.layer_norm(x, (D,), gamma, beta) over the last dimension of x."""
    orig_shape = x.shape
    d = orig_shape[-1]
    m = 1
    for s in orig_shape[:-1]:
        m *= s
    # Fold all leading dims (batch, seq, ...) into one M dimension.
    x2 = x.reshape(m, d)
    if beta is None:
        beta = jnp.zeros((d,), jnp.float32)
    gamma2 = gamma.reshape(1, d).astype(jnp.float32)
    beta2 = beta.reshape(1, d).astype(jnp.float32)

    tm = block_rows or _pick_block_rows(m)
    grid = (m // tm,)

    out = pl.pallas_call(
        _layernorm_kernel,
        out_shape=jax.ShapeDtypeStruct((m, d), x.dtype),
        grid=grid,
        in_specs=[
            pl.BlockSpec((tm, d), lambda i: (i, 0)),     # row tile of x
            pl.BlockSpec((1, d), lambda i: (0, 0)),      # gamma (constant)
            pl.BlockSpec((1, d), lambda i: (0, 0)),      # beta  (constant)
        ],
        out_specs=pl.BlockSpec((tm, d), lambda i: (i, 0)),
        compiler_params=pltpu.CompilerParams(
            dimension_semantics=("parallel",)),          # rows are independent
    )(x2, gamma2, beta2)
    return out.reshape(orig_shape)


# ----------------------------- main ------------------------------------------
if __name__ == "__main__":
    key = jax.random.PRNGKey(0)
    kx, kg = jax.random.split(key)

    # Small shapes consistent with the module: x = (batch, seq, dim), dim = 128.
    B, S, D = 2, 128, 128
    x = jax.random.normal(kx, (B, S, D), dtype=jnp.float32)
    gamma = 1.0 + 0.02 * jax.random.normal(kg, (D,), dtype=jnp.float32)
    beta = jnp.zeros((D,), jnp.float32)   # module registers beta as a zero buffer

    out = layer_norm(x, gamma, beta)
    jax.block_until_ready(out)

    # Pure-JAX reference (F.layer_norm semantics) for a tolerance check.
    mu = jnp.mean(x, axis=-1, keepdims=True)
    var = jnp.mean((x - mu) ** 2, axis=-1, keepdims=True)
    ref = (x - mu) * jax.lax.rsqrt(var + LN_EPS) * gamma + beta

    assert out.shape == (B, S, D)
    assert float(jnp.max(jnp.abs(out - ref))) < 1e-4
    print("KERNEL_OK")
</pallas_src>

<mosaic_0001>
module attributes {stable_mosaic.version = 11 : i64} {
  func.func @_layernorm_kernel(%arg0: i32, %arg1: memref<256x128xf32, #tpu.memory_space<vmem>>, %arg2: memref<1x128xf32, #tpu.memory_space<vmem>>, %arg3: memref<1x128xf32, #tpu.memory_space<vmem>>, %arg4: memref<256x128xf32, #tpu.memory_space<vmem>>) attributes {dimension_semantics = [#tpu.dimension_semantics<parallel>], iteration_bounds = array<i64: 1>, scalar_prefetch = 0 : i64, scratch_operands = 0 : i64, tpu.core_type = #tpu.core_type<tc>, window_params = [{transform_indices = @transform_0, window_bounds = array<i64: 256, 128>}, {pipeline_mode = #tpu.pipeline_mode<synchronous>, transform_indices = @transform_1, window_bounds = array<i64: 1, 128>}, {pipeline_mode = #tpu.pipeline_mode<synchronous>, transform_indices = @transform_2, window_bounds = array<i64: 1, 128>}, {transform_indices = @transform_3, window_bounds = array<i64: 256, 128>}]} {
    %c0 = arith.constant 0 : index
    %c0_0 = arith.constant 0 : index
    %0 = vector.load %arg1[%c0, %c0_0] : memref<256x128xf32, #tpu.memory_space<vmem>>, vector<256x128xf32>
    %cst = arith.constant dense<0.000000e+00> : vector<256xf32>
    %1 = vector.multi_reduction <add>, %0, %cst [1] : vector<256x128xf32> to vector<256xf32>
    %2 = vector.shape_cast %1 : vector<256xf32> to vector<256x1xf32>
    %3 = arith.mulf %0, %0 : vector<256x128xf32>
    %cst_1 = arith.constant dense<0.000000e+00> : vector<256xf32>
    %4 = vector.multi_reduction <add>, %3, %cst_1 [1] : vector<256x128xf32> to vector<256xf32>
    %5 = vector.shape_cast %4 : vector<256xf32> to vector<256x1xf32>
    %cst_2 = arith.constant 7.812500e-03 : f32
    %6 = vector.broadcast %cst_2 : f32 to vector<256x1xf32>
    %7 = arith.mulf %2, %6 : vector<256x1xf32>
    %cst_3 = arith.constant 7.812500e-03 : f32
    %8 = vector.broadcast %cst_3 : f32 to vector<256x1xf32>
    %9 = arith.mulf %5, %8 : vector<256x1xf32>
    %10 = arith.mulf %7, %7 : vector<256x1xf32>
    %11 = arith.subf %9, %10 : vector<256x1xf32>
    %cst_4 = arith.constant 9.99999974E-6 : f32
    %12 = vector.broadcast %cst_4 : f32 to vector<256x1xf32>
    %13 = arith.addf %11, %12 : vector<256x1xf32>
    %14 = math.rsqrt %13 : vector<256x1xf32>
    %15 = vector.broadcast %7 : vector<256x1xf32> to vector<256x128xf32>
    %16 = arith.subf %0, %15 : vector<256x128xf32>
    %17 = vector.broadcast %14 : vector<256x1xf32> to vector<256x128xf32>
    %18 = arith.mulf %16, %17 : vector<256x128xf32>
    %c0_5 = arith.constant 0 : index
    %c0_6 = arith.constant 0 : index
    %19 = vector.load %arg2[%c0_5, %c0_6] : memref<1x128xf32, #tpu.memory_space<vmem>>, vector<1x128xf32>
    %20 = vector.broadcast %19 : vector<1x128xf32> to vector<256x128xf32>
    %21 = arith.mulf %18, %20 : vector<256x128xf32>
    %c0_7 = arith.constant 0 : index
    %c0_8 = arith.constant 0 : index
    %22 = vector.load %arg3[%c0_7, %c0_8] : memref<1x128xf32, #tpu.memory_space<vmem>>, vector<1x128xf32>
    %23 = vector.broadcast %22 : vector<1x128xf32> to vector<256x128xf32>
    %24 = arith.addf %21, %23 : vector<256x128xf32>
    %c0_9 = arith.constant 0 : index
    %c0_10 = arith.constant 0 : index
    %25 = vector.load %arg4[%c0_9, %c0_10] : memref<256x128xf32, #tpu.memory_space<vmem>>, vector<256x128xf32>
    tpu.vector_store %arg4[%c0_9, %c0_10], %24 {strides = array<i32>} : memref<256x128xf32, #tpu.memory_space<vmem>>, vector<256x128xf32>,
    return
  }
  func.func @transform_0(%arg0: i32) -> (i32, i32) {
    %c0_i32 = arith.constant 0 : i32
    %c0_i32_0 = arith.constant 0 : i32
    return %arg0, %c0_i32 : i32, i32
  }
  func.func @transform_1(%arg0: i32) -> (i32, i32) {
    %c0_i32 = arith.constant 0 : i32
    %c0_i32_0 = arith.constant 0 : i32
    %c0_i32_1 = arith.constant 0 : i32
    return %c0_i32, %c0_i32_0 : i32, i32
  }
  func.func @transform_2(%arg0: i32) -> (i32, i32) {
    %c0_i32 = arith.constant 0 : i32
    %c0_i32_0 = arith.constant 0 : i32
    %c0_i32_1 = arith.constant 0 : i32
    return %c0_i32, %c0_i32_0 : i32, i32
  }
  func.func @transform_3(%arg0: i32) -> (i32, i32) {
    %c0_i32 = arith.constant 0 : i32
    %c0_i32_0 = arith.constant 0 : i32
    return %arg0, %c0_i32 : i32, i32
  }
}

</mosaic_0001>

<llo_original>
// kernel: tpu_custom_call.1
$region0: #{tpu_custom_call.1}
  #allocation0 [shape = 'u32[]', space=smem, size = 0x4, offset = 0x4, fixed_abs, tag = 'smem constant byte address 0x4 - core index']
  #allocation1 [shape = 'u32[144,128]{1,0:T(1,128)}', space=vmem, size = 0x12000, scoped, tag = 'internal scratch']
  %s0 = inlined_call_operand.hbm [shape: f32[256,128], index: 0, kind: input, shape index: {}]
  %s1 = inlined_call_operand.vmem [shape: f32[1,128], index: 1, kind: input, shape index: {}]
  %s2 = inlined_call_operand.vmem [shape: f32[1,128], index: 2, kind: input, shape index: {}]
  %s3 = inlined_call_operand.hbm [shape: f32[256,128], index: 3, kind: output, shape index: {}]
  %s4 = sld [smem:[#allocation0]]
  $region26: #{tpu_custom_call.1} parent=0
    _
  %s6 = ssub.s32 1, %s4
  %s7 = scalar_select 0, %s6, %s4
  $region1: #{tpu_custom_call.1} parent=0
    #allocation2 [shape = 'u8[131072]{0}', space=vmem, size = 0x20000, scoped, tag = 'input window, operand 0, single buffered']
    #allocation3 [shape = 's32[1]{0}', space=sflag, size = 0x4, scoped, tag = 'scoped memory for tpu_custom_call.1']
    #allocation4 [shape = 's32[1]{0}', space=sflag, size = 0x4, scoped, tag = 'scoped memory for tpu_custom_call.1']
    #allocation5 [shape = 'u8[131072]{0}', space=vmem, size = 0x20000, scoped, tag = 'output window, operand 0, single buffered']
    %8 = vsyncpa [#allocation3], 0
    %9 = vsyncpa [#allocation4], 0
    // Predicated region
    $region2: #{tpu_custom_call.1} parent=1 // pred_check
      _
    $region3: #{tpu_custom_call.1} parent=1 // pred_check_branch
      %11 = sbr.rel (0) target = $region5
    $region4: #{tpu_custom_call.1} parent=1 // pred_region
      %s13 = ssub.s32 4096, 4096
      %14 = vsyncadd [#allocation3], %s13
      %s15 = sshll.u32 [#allocation2], 4
      %s16 = int_to_ptr.vmem [resolvable:$true] %s15
      %21 = dma.hbm_to_vmem [thread:$0]  %s0, 4096, %s16, [#allocation3], 128, 128, 8
    $region5: #{tpu_custom_call.1} parent=1 // pred_fallthru
      _
    // Predicated region
    $region6: #{tpu_custom_call.1} parent=1 // pred_check
      _
    $region7: #{tpu_custom_call.1} parent=1 // pred_check_branch
      %23 = sbr.rel (0) target = $region9
    $region8: #{tpu_custom_call.1} parent=1 // pred_region
      _
    $region9: #{tpu_custom_call.1} parent=1 // pred_fallthru
      _
    // Predicated region
    $region10: #{tpu_custom_call.1} parent=1 // pred_check
      _
    $region11: #{tpu_custom_call.1} parent=1 // pred_check_branch
      %25 = sbr.rel (0) target = $region13
    $region12: #{tpu_custom_call.1} parent=1 // pred_region
      _
    $region13: #{tpu_custom_call.1} parent=1 // pred_fallthru
      _
    // Predicated region
    $region14: #{tpu_custom_call.1} parent=1 // pred_check
      _
    $region15: #{tpu_custom_call.1} parent=1 // pred_check_branch
      %27 = sbr.rel (0) target = $region17
    $region16: #{tpu_custom_call.1} parent=1 // pred_region
      %28 = dma.done [#allocation3], 4096
    $region17: #{tpu_custom_call.1} parent=1 // pred_fallthru
      _
    %v29 = vld [vmem:[#allocation2] sm:$0xff]
    %v30 = vld [vmem:[#allocation2 + $0x8] sm:$0xff]
    %v31 = vld [vmem:[#allocation2 + $0x10] sm:$0xff]
    %v32 = vld [vmem:[#allocation2 + $0x18] sm:$0xff]
    %v33 = vld [vmem:[#allocation2 + $0x20] sm:$0xff]
    %v34 = vld [vmem:[#allocation2 + $0x28] sm:$0xff]
    %v35 = vld [vmem:[#allocation2 + $0x30] sm:$0xff]
    %v36 = vld [vmem:[#allocation2 + $0x38] sm:$0xff]
    %v37 = vld [vmem:[#allocation2 + $0x40] sm:$0xff]
    %v38 = vld [vmem:[#allocation2 + $0x48] sm:$0xff]
    %v39 = vld [vmem:[#allocation2 + $0x50] sm:$0xff]
    %v40 = vld [vmem:[#allocation2 + $0x58] sm:$0xff]
    %v41 = vld [vmem:[#allocation2 + $0x60] sm:$0xff]
    %v42 = vld [vmem:[#allocation2 + $0x68] sm:$0xff]
    %v43 = vld [vmem:[#allocation2 + $0x70] sm:$0xff]
    %v44 = vld [vmem:[#allocation2 + $0x78] sm:$0xff]
    %v45 = vld [vmem:[#allocation2 + $0x80] sm:$0xff]
    %v46 = vld [vmem:[#allocation2 + $0x88] sm:$0xff]
    %v47 = vld [vmem:[#allocation2 + $0x90] sm:$0xff]
    %v48 = vld [vmem:[#allocation2 + $0x98] sm:$0xff]
    %v49 = vld [vmem:[#allocation2 + $0xa0] sm:$0xff]
    %v50 = vld [vmem:[#allocation2 + $0xa8] sm:$0xff]
    %v51 = vld [vmem:[#allocation2 + $0xb0] sm:$0xff]
    %v52 = vld [vmem:[#allocation2 + $0xb8] sm:$0xff]
    %v53 = vld [vmem:[#allocation2 + $0xc0] sm:$0xff]
    %v54 = vld [vmem:[#allocation2 + $0xc8] sm:$0xff]
    %v55 = vld [vmem:[#allocation2 + $0xd0] sm:$0xff]
    %v56 = vld [vmem:[#allocation2 + $0xd8] sm:$0xff]
    %v57 = vld [vmem:[#allocation2 + $0xe0] sm:$0xff]
    %v58 = vld [vmem:[#allocation2 + $0xe8] sm:$0xff]
    %v59 = vld [vmem:[#allocation2 + $0xf0] sm:$0xff]
    %v60 = vld [vmem:[#allocation2 + $0xf8] sm:$0xff]
    %61 = vadd.xlane.f32.xlu0 %v29
    %v62 = vpop.xlane.xlu0 %61
    %63 = vadd.xlane.f32.xlu0 %v30
    %v64 = vpop.xlane.xlu0 %63
    %65 = vadd.xlane.f32.xlu0 %v31
    %v66 = vpop.xlane.xlu0 %65
    %67 = vadd.xlane.f32.xlu0 %v32
    %v68 = vpop.xlane.xlu0 %67
    %69 = vadd.xlane.f32.xlu0 %v33
    %v70 = vpop.xlane.xlu0 %69
    %71 = vadd.xlane.f32.xlu0 %v34
    %v72 = vpop.xlane.xlu0 %71
    %73 = vadd.xlane.f32.xlu0 %v35
    %v74 = vpop.xlane.xlu0 %73
    %75 = vadd.xlane.f32.xlu0 %v36
    %v76 = vpop.xlane.xlu0 %75
    %77 = vadd.xlane.f32.xlu0 %v37
    %v78 = vpop.xlane.xlu0 %77
    %79 = vadd.xlane.f32.xlu0 %v38
    %v80 = vpop.xlane.xlu0 %79
    %81 = vadd.xlane.f32.xlu0 %v39
    %v82 = vpop.xlane.xlu0 %81
    %83 = vadd.xlane.f32.xlu0 %v40
    %v84 = vpop.xlane.xlu0 %83
    %85 = vadd.xlane.f32.xlu0 %v41
    %v86 = vpop.xlane.xlu0 %85
    %87 = vadd.xlane.f32.xlu0 %v42
    %v88 = vpop.xlane.xlu0 %87
    %89 = vadd.xlane.f32.xlu0 %v43
    %v90 = vpop.xlane.xlu0 %89
    %91 = vadd.xlane.f32.xlu0 %v44
    %v92 = vpop.xlane.xlu0 %91
    %93 = vadd.xlane.f32.xlu0 %v45
    %v94 = vpop.xlane.xlu0 %93
    %95 = vadd.xlane.f32.xlu0 %v46
    %v96 = vpop.xlane.xlu0 %95
    %97 = vadd.xlane.f32.xlu0 %v47
    %v98 = vpop.xlane.xlu0 %97
    %99 = vadd.xlane.f32.xlu0 %v48
    %v100 = vpop.xlane.xlu0 %99
    %101 = vadd.xlane.f32.xlu0 %v49
    %v102 = vpop.xlane.xlu0 %101
    %103 = vadd.xlane.f32.xlu0 %v50
    %v104 = vpop.xlane.xlu0 %103
    %105 = vadd.xlane.f32.xlu0 %v51
    %v106 = vpop.xlane.xlu0 %105
    %107 = vadd.xlane.f32.xlu0 %v52
    %v108 = vpop.xlane.xlu0 %107
    %109 = vadd.xlane.f32.xlu0 %v53
    %v110 = vpop.xlane.xlu0 %109
    %111 = vadd.xlane.f32.xlu0 %v54
    %v112 = vpop.xlane.xlu0 %111
    %113 = vadd.xlane.f32.xlu0 %v55
    %v114 = vpop.xlane.xlu0 %113
    %115 = vadd.xlane.f32.xlu0 %v56
    %v116 = vpop.xlane.xlu0 %115
    %117 = vadd.xlane.f32.xlu0 %v57
    %v118 = vpop.xlane.xlu0 %117
    %119 = vadd.xlane.f32.xlu0 %v58
    %v120 = vpop.xlane.xlu0 %119
    %121 = vadd.xlane.f32.xlu0 %v59
    %v122 = vpop.xlane.xlu0 %121
    %123 = vadd.xlane.f32.xlu0 %v60
    %v124 = vpop.xlane.xlu0 %123
    %v125 = vmul.f32 %v29, %v29
    %v126 = vmul.f32 %v30, %v30
    %v127 = vmul.f32 %v31, %v31
    %v128 = vmul.f32 %v32, %v32
    %v129 = vmul.f32 %v33, %v33
    %v130 = vmul.f32 %v34, %v34
    %v131 = vmul.f32 %v35, %v35
    %v132 = vmul.f32 %v36, %v36
    %v133 = vmul.f32 %v37, %v37
    %v134 = vmul.f32 %v38, %v38
    %v135 = vmul.f32 %v39, %v39
    %v136 = vmul.f32 %v40, %v40
    %v137 = vmul.f32 %v41, %v41
    %v138 = vmul.f32 %v42, %v42
    %v139 = vmul.f32 %v43, %v43
    %v140 = vmul.f32 %v44, %v44
    %v141 = vmul.f32 %v45, %v45
    %v142 = vmul.f32 %v46, %v46
    %v143 = vmul.f32 %v47, %v47
    %v144 = vmul.f32 %v48, %v48
    %v145 = vmul.f32 %v49, %v49
    %v146 = vmul.f32 %v50, %v50
    %v147 = vmul.f32 %v51, %v51
    %v148 = vmul.f32 %v52, %v52
    %v149 = vmul.f32 %v53, %v53
    %v150 = vmul.f32 %v54, %v54
    %v151 = vmul.f32 %v55, %v55
    %v152 = vmul.f32 %v56, %v56
    %v153 = vmul.f32 %v57, %v57
    %v154 = vmul.f32 %v58, %v58
    %v155 = vmul.f32 %v59, %v59
    %v156 = vmul.f32 %v60, %v60
    %157 = vadd.xlane.f32.xlu0 %v125
    %v158 = vpop.xlane.xlu0 %157
    %159 = vadd.xlane.f32.xlu0 %v126
    %v160 = vpop.xlane.xlu0 %159
    %161 = vadd.xlane.f32.xlu0 %v127
    %v162 = vpop.xlane.xlu0 %161
    %163 = vadd.xlane.f32.xlu0 %v128
    %v164 = vpop.xlane.xlu0 %163
    %165 = vadd.xlane.f32.xlu0 %v129
    %v166 = vpop.xlane.xlu0 %165
    %167 = vadd.xlane.f32.xlu0 %v130
    %v168 = vpop.xlane.xlu0 %167
    %169 = vadd.xlane.f32.xlu0 %v131
    %v170 = vpop.xlane.xlu0 %169
    %171 = vadd.xlane.f32.xlu0 %v132
    %v172 = vpop.xlane.xlu0 %171
    %173 = vadd.xlane.f32.xlu0 %v133
    %v174 = vpop.xlane.xlu0 %173
    %175 = vadd.xlane.f32.xlu0 %v134
    %v176 = vpop.xlane.xlu0 %175
    %177 = vadd.xlane.f32.xlu0 %v135
    %v178 = vpop.xlane.xlu0 %177
    %179 = vadd.xlane.f32.xlu0 %v136
    %v180 = vpop.xlane.xlu0 %179
    %181 = vadd.xlane.f32.xlu0 %v137
    %v182 = vpop.xlane.xlu0 %181
    %183 = vadd.xlane.f32.xlu0 %v138
    %v184 = vpop.xlane.xlu0 %183
    %185 = vadd.xlane.f32.xlu0 %v139
    %v186 = vpop.xlane.xlu0 %185
    %187 = vadd.xlane.f32.xlu0 %v140
    %v188 = vpop.xlane.xlu0 %187
    %189 = vadd.xlane.f32.xlu0 %v141
    %v190 = vpop.xlane.xlu0 %189
    %191 = vadd.xlane.f32.xlu0 %v142
    %v192 = vpop.xlane.xlu0 %191
    %193 = vadd.xlane.f32.xlu0 %v143
    %v194 = vpop.xlane.xlu0 %193
    %195 = vadd.xlane.f32.xlu0 %v144
    %v196 = vpop.xlane.xlu0 %195
    %197 = vadd.xlane.f32.xlu0 %v145
    %v198 = vpop.xlane.xlu0 %197
    %199 = vadd.xlane.f32.xlu0 %v146
    %v200 = vpop.xlane.xlu0 %199
    %201 = vadd.xlane.f32.xlu0 %v147
    %v202 = vpop.xlane.xlu0 %201
    %203 = vadd.xlane.f32.xlu0 %v148
    %v204 = vpop.xlane.xlu0 %203
    %205 = vadd.xlane.f32.xlu0 %v149
    %v206 = vpop.xlane.xlu0 %205
    %207 = vadd.xlane.f32.xlu0 %v150
    %v208 = vpop.xlane.xlu0 %207
    %209 = vadd.xlane.f32.xlu0 %v151
    %v210 = vpop.xlane.xlu0 %209
    %211 = vadd.xlane.f32.xlu0 %v152
    %v212 = vpop.xlane.xlu0 %211
    %213 = vadd.xlane.f32.xlu0 %v153
    %v214 = vpop.xlane.xlu0 %213
    %215 = vadd.xlane.f32.xlu0 %v154
    %v216 = vpop.xlane.xlu0 %215
    %217 = vadd.xlane.f32.xlu0 %v155
    %v218 = vpop.xlane.xlu0 %217
    %219 = vadd.xlane.f32.xlu0 %v156
    %v220 = vpop.xlane.xlu0 %219
    %v221 = vmul.f32 %v62, 0.0078125
    %v222 = vmul.f32 %v64, 0.0078125
    %v223 = vmul.f32 %v66, 0.0078125
    %v224 = vmul.f32 %v68, 0.0078125
    %v225 = vmul.f32 %v70, 0.0078125
    %v226 = vmul.f32 %v72, 0.0078125
    %v227 = vmul.f32 %v74, 0.0078125
    %v228 = vmul.f32 %v76, 0.0078125
    %v229 = vmul.f32 %v78, 0.0078125
    %v230 = vmul.f32 %v80, 0.0078125
    %v231 = vmul.f32 %v82, 0.0078125
    %v232 = vmul.f32 %v84, 0.0078125
    %v233 = vmul.f32 %v86, 0.0078125
    %v234 = vmul.f32 %v88, 0.0078125
    %v235 = vmul.f32 %v90, 0.0078125
    %v236 = vmul.f32 %v92, 0.0078125
    %v237 = vmul.f32 %v94, 0.0078125
    %v238 = vmul.f32 %v96, 0.0078125
    %v239 = vmul.f32 %v98, 0.0078125
    %v240 = vmul.f32 %v100, 0.0078125
    %v241 = vmul.f32 %v102, 0.0078125
    %v242 = vmul.f32 %v104, 0.0078125
    %v243 = vmul.f32 %v106, 0.0078125
    %v244 = vmul.f32 %v108, 0.0078125
    %v245 = vmul.f32 %v110, 0.0078125
    %v246 = vmul.f32 %v112, 0.0078125
    %v247 = vmul.f32 %v114, 0.0078125
    %v248 = vmul.f32 %v116, 0.0078125
    %v249 = vmul.f32 %v118, 0.0078125
    %v250 = vmul.f32 %v120, 0.0078125
    %v251 = vmul.f32 %v122, 0.0078125
    %v252 = vmul.f32 %v124, 0.0078125
    %v253 = vmul.f32 %v158, 0.0078125
    %v254 = vmul.f32 %v160, 0.0078125
    %v255 = vmul.f32 %v162, 0.0078125
    %v256 = vmul.f32 %v164, 0.0078125
    %v257 = vmul.f32 %v166, 0.0078125
    %v258 = vmul.f32 %v168, 0.0078125
    %v259 = vmul.f32 %v170, 0.0078125
    %v260 = vmul.f32 %v172, 0.0078125
    %v261 = vmul.f32 %v174, 0.0078125
    %v262 = vmul.f32 %v176, 0.0078125
    %v263 = vmul.f32 %v178, 0.0078125
    %v264 = vmul.f32 %v180, 0.0078125
    %v265 = vmul.f32 %v182, 0.0078125
    %v266 = vmul.f32 %v184, 0.0078125
    %v267 = vmul.f32 %v186, 0.0078125
    %v268 = vmul.f32 %v188, 0.0078125
    %v269 = vmul.f32 %v190, 0.0078125
    %v270 = vmul.f32 %v192, 0.0078125
    %v271 = vmul.f32 %v194, 0.0078125
    %v272 = vmul.f32 %v196, 0.0078125
    %v273 = vmul.f32 %v198, 0.0078125
    %v274 = vmul.f32 %v200, 0.0078125
    %v275 = vmul.f32 %v202, 0.0078125
    %v276 = vmul.f32 %v204, 0.0078125
    %v277 = vmul.f32 %v206, 0.0078125
    %v278 = vmul.f32 %v208, 0.0078125
    %v279 = vmul.f32 %v210, 0.0078125
    %v280 = vmul.f32 %v212, 0.0078125
    %v281 = vmul.f32 %v214, 0.0078125
    %v282 = vmul.f32 %v216, 0.0078125
    %v283 = vmul.f32 %v218, 0.0078125
    %v284 = vmul.f32 %v220, 0.0078125
    %v285 = vmul.f32 %v221, %v221
    %v286 = vmul.f32 %v222, %v222
    %v287 = vmul.f32 %v223, %v223
    %v288 = vmul.f32 %v224, %v224
    %v289 = vmul.f32 %v225, %v225
    %v290 = vmul.f32 %v226, %v226
    %v291 = vmul.f32 %v227, %v227
    %v292 = vmul.f32 %v228, %v228
    %v293 = vmul.f32 %v229, %v229
    %v294 = vmul.f32 %v230, %v230
    %v295 = vmul.f32 %v231, %v231
    %v296 = vmul.f32 %v232, %v232
    %v297 = vmul.f32 %v233, %v233
    %v298 = vmul.f32 %v234, %v234
    %v299 = vmul.f32 %v235, %v235
    %v300 = vmul.f32 %v236, %v236
    %v301 = vmul.f32 %v237, %v237
    %v302 = vmul.f32 %v238, %v238
    %v303 = vmul.f32 %v239, %v239
    %v304 = vmul.f32 %v240, %v240
    %v305 = vmul.f32 %v241, %v241
    %v306 = vmul.f32 %v242, %v242
    %v307 = vmul.f32 %v243, %v243
    %v308 = vmul.f32 %v244, %v244
    %v309 = vmul.f32 %v245, %v245
    %v310 = vmul.f32 %v246, %v246
    %v311 = vmul.f32 %v247, %v247
    %v312 = vmul.f32 %v248, %v248
    %v313 = vmul.f32 %v249, %v249
    %v314 = vmul.f32 %v250, %v250
    %v315 = vmul.f32 %v251, %v251
    %v316 = vmul.f32 %v252, %v252
    %v317 = vsub.f32 %v253, %v285
    %v318 = vsub.f32 %v254, %v286
    %v319 = vsub.f32 %v255, %v287
    %v320 = vsub.f32 %v256, %v288
    %v321 = vsub.f32 %v257, %v289
    %v322 = vsub.f32 %v258, %v290
    %v323 = vsub.f32 %v259, %v291
    %v324 = vsub.f32 %v260, %v292
    %v325 = vsub.f32 %v261, %v293
    %v326 = vsub.f32 %v262, %v294
    %v327 = vsub.f32 %v263, %v295
    %v328 = vsub.f32 %v264, %v296
    %v329 = vsub.f32 %v265, %v297
    %v330 = vsub.f32 %v266, %v298
    %v331 = vsub.f32 %v267, %v299
    %v332 = vsub.f32 %v268, %v300
    %v333 = vsub.f32 %v269, %v301
    %v334 = vsub.f32 %v270, %v302
    %v335 = vsub.f32 %v271, %v303
    %v336 = vsub.f32 %v272, %v304
    %v337 = vsub.f32 %v273, %v305
    %v338 = vsub.f32 %v274, %v306
    %v339 = vsub.f32 %v275, %v307
    %v340 = vsub.f32 %v276, %v308
    %v341 = vsub.f32 %v277, %v309
    %v342 = vsub.f32 %v278, %v310
    %v343 = vsub.f32 %v279, %v311
    %v344 = vsub.f32 %v280, %v312
    %v345 = vsub.f32 %v281, %v313
    %v346 = vsub.f32 %v282, %v314
    %v347 = vsub.f32 %v283, %v315
    %v348 = vsub.f32 %v284, %v316
    %v349 = vadd.f32 %v317, 1e-05
    %v350 = vadd.f32 %v318, 1e-05
    %v351 = vadd.f32 %v319, 1e-05
    %v352 = vadd.f32 %v320, 1e-05
    %v353 = vadd.f32 %v321, 1e-05
    %v354 = vadd.f32 %v322, 1e-05
    %v355 = vadd.f32 %v323, 1e-05
    %v356 = vadd.f32 %v324, 1e-05
    %v357 = vadd.f32 %v325, 1e-05
    %v358 = vadd.f32 %v326, 1e-05
    %v359 = vadd.f32 %v327, 1e-05
    %v360 = vadd.f32 %v328, 1e-05
    %v361 = vadd.f32 %v329, 1e-05
    %v362 = vadd.f32 %v330, 1e-05
    %v363 = vadd.f32 %v331, 1e-05
    %v364 = vadd.f32 %v332, 1e-05
    %v365 = vadd.f32 %v333, 1e-05
    %v366 = vadd.f32 %v334, 1e-05
    %v367 = vadd.f32 %v335, 1e-05
    %v368 = vadd.f32 %v336, 1e-05
    %v369 = vadd.f32 %v337, 1e-05
    %v370 = vadd.f32 %v338, 1e-05
    %v371 = vadd.f32 %v339, 1e-05
    %v372 = vadd.f32 %v340, 1e-05
    %v373 = vadd.f32 %v341, 1e-05
    %v374 = vadd.f32 %v342, 1e-05
    %v375 = vadd.f32 %v343, 1e-05
    %v376 = vadd.f32 %v344, 1e-05
    %v377 = vadd.f32 %v345, 1e-05
    %v378 = vadd.f32 %v346, 1e-05
    %v379 = vadd.f32 %v347, 1e-05
    %v380 = vadd.f32 %v348, 1e-05
    %v381 = vrsqrt.pop %v349
    %v382 = vrsqrt.pop %v350
    %v383 = vrsqrt.pop %v351
    %v384 = vrsqrt.pop %v352
    %v385 = vrsqrt.pop %v353
    %v386 = vrsqrt.pop %v354
    %v387 = vrsqrt.pop %v355
    %v388 = vrsqrt.pop %v356
    %v389 = vrsqrt.pop %v357
    %v390 = vrsqrt.pop %v358
    %v391 = vrsqrt.pop %v359
    %v392 = vrsqrt.pop %v360
    %v393 = vrsqrt.pop %v361
    %v394 = vrsqrt.pop %v362
    %v395 = vrsqrt.pop %v363
    %v396 = vrsqrt.pop %v364
    %v397 = vrsqrt.pop %v365
    %v398 = vrsqrt.pop %v366
    %v399 = vrsqrt.pop %v367
    %v400 = vrsqrt.pop %v368
    %v401 = vrsqrt.pop %v369
    %v402 = vrsqrt.pop %v370
    %v403 = vrsqrt.pop %v371
    %v404 = vrsqrt.pop %v372
    %v405 = vrsqrt.pop %v373
    %v406 = vrsqrt.pop %v374
    %v407 = vrsqrt.pop %v375
    %v408 = vrsqrt.pop %v376
    %v409 = vrsqrt.pop %v377
    %v410 = vrsqrt.pop %v378
    %v411 = vrsqrt.pop %v379
    %v412 = vrsqrt.pop %v380
    %v413 = vsub.f32 %v29, %v221
    %v414 = vsub.f32 %v30, %v222
    %v415 = vsub.f32 %v31, %v223
    %v416 = vsub.f32 %v32, %v224
    %v417 = vsub.f32 %v33, %v225
    %v418 = vsub.f32 %v34, %v226
    %v419 = vsub.f32 %v35, %v227
    %v420 = vsub.f32 %v36, %v228
    %v421 = vsub.f32 %v37, %v229
    %v422 = vsub.f32 %v38, %v230
    %v423 = vsub.f32 %v39, %v231
    %v424 = vsub.f32 %v40, %v232
    %v425 = vsub.f32 %v41, %v233
    %v426 = vsub.f32 %v42, %v234
    %v427 = vsub.f32 %v43, %v235
    %v428 = vsub.f32 %v44, %v236
    %v429 = vsub.f32 %v45, %v237
    %v430 = vsub.f32 %v46, %v238
    %v431 = vsub.f32 %v47, %v239
    %v432 = vsub.f32 %v48, %v240
    %v433 = vsub.f32 %v49, %v241
    %v434 = vsub.f32 %v50, %v242
    %v435 = vsub.f32 %v51, %v243
    %v436 = vsub.f32 %v52, %v244
    %v437 = vsub.f32 %v53, %v245
    %v438 = vsub.f32 %v54, %v246
    %v439 = vsub.f32 %v55, %v247
    %v440 = vsub.f32 %v56, %v248
    %v441 = vsub.f32 %v57, %v249
    %v442 = vsub.f32 %v58, %v250
    %v443 = vsub.f32 %v59, %v251
    %v444 = vsub.f32 %v60, %v252
    %v445 = vmul.f32 %v413, %v381
    %v446 = vmul.f32 %v414, %v382
    %v447 = vmul.f32 %v415, %v383
    %v448 = vmul.f32 %v416, %v384
    %v449 = vmul.f32 %v417, %v385
    %v450 = vmul.f32 %v418, %v386
    %v451 = vmul.f32 %v419, %v387
    %v452 = vmul.f32 %v420, %v388
    %v453 = vmul.f32 %v421, %v389
    %v454 = vmul.f32 %v422, %v390
    %v455 = vmul.f32 %v423, %v391
    %v456 = vmul.f32 %v424, %v392
    %v457 = vmul.f32 %v425, %v393
    %v458 = vmul.f32 %v426, %v394
    %v459 = vmul.f32 %v427, %v395
    %v460 = vmul.f32 %v428, %v396
    %v461 = vmul.f32 %v429, %v397
    %v462 = vmul.f32 %v430, %v398
    %v463 = vmul.f32 %v431, %v399
    %v464 = vmul.f32 %v432, %v400
    %v465 = vmul.f32 %v433, %v401
    %v466 = vmul.f32 %v434, %v402
    %v467 = vmul.f32 %v435, %v403
    %v468 = vmul.f32 %v436, %v404
    %v469 = vmul.f32 %v437, %v405
    %v470 = vmul.f32 %v438, %v406
    %v471 = vmul.f32 %v439, %v407
    %v472 = vmul.f32 %v440, %v408
    %v473 = vmul.f32 %v441, %v409
    %v474 = vmul.f32 %v442, %v410
    %v475 = vmul.f32 %v443, %v411
    %v476 = vmul.f32 %v444, %v412
    %v477 = vld [vmem:[%s1] sm:$0x1]
    %v479 = vlaneseq
    %v480 = vshrl.u32 %v479, 7
    %v481 = vsub.s32 0, %v480
    %v482 = vrot.slane %v477, %v481
    %v484 = vmul.f32 %v445, %v482
    %v485 = vmul.f32 %v446, %v482
    %v486 = vmul.f32 %v447, %v482
    %v487 = vmul.f32 %v448, %v482
    %v488 = vmul.f32 %v449, %v482
    %v489 = vmul.f32 %v450, %v482
    %v490 = vmul.f32 %v451, %v482
    %v491 = vmul.f32 %v452, %v482
    %v492 = vmul.f32 %v453, %v482
    %v493 = vmul.f32 %v454, %v482
    %v494 = vmul.f32 %v455, %v482
    %v495 = vmul.f32 %v456, %v482
    %v496 = vmul.f32 %v457, %v482
    %v497 = vmul.f32 %v458, %v482
    %v498 = vmul.f32 %v459, %v482
    %v499 = vmul.f32 %v460, %v482
    %v500 = vmul.f32 %v461, %v482
    %v501 = vmul.f32 %v462, %v482
    %v502 = vmul.f32 %v463, %v482
    %v503 = vmul.f32 %v464, %v482
    %v504 = vmul.f32 %v465, %v482
    %v505 = vmul.f32 %v466, %v482
    %v506 = vmul.f32 %v467, %v482
    %v507 = vmul.f32 %v468, %v482
    %v508 = vmul.f32 %v469, %v482
    %v509 = vmul.f32 %v470, %v482
    %v510 = vmul.f32 %v471, %v482
    %v511 = vmul.f32 %v472, %v482
    %v512 = vmul.f32 %v473, %v482
    %v513 = vmul.f32 %v474, %v482
    %v514 = vmul.f32 %v475, %v482
    %v515 = vmul.f32 %v476, %v482
    %v516 = vld [vmem:[%s2] sm:$0x1]
    %v518 = vlaneseq
    %v519 = vshrl.u32 %v518, 7
    %v520 = vsub.s32 0, %v519
    %v521 = vrot.slane %v516, %v520
    %v523 = vadd.f32 %v484, %v521
    %v524 = vadd.f32 %v485, %v521
    %v525 = vadd.f32 %v486, %v521
    %v526 = vadd.f32 %v487, %v521
    %v527 = vadd.f32 %v488, %v521
    %v528 = vadd.f32 %v489, %v521
    %v529 = vadd.f32 %v490, %v521
    %v530 = vadd.f32 %v491, %v521
    %v531 = vadd.f32 %v492, %v521
    %v532 = vadd.f32 %v493, %v521
    %v533 = vadd.f32 %v494, %v521
    %v534 = vadd.f32 %v495, %v521
    %v535 = vadd.f32 %v496, %v521
    %v536 = vadd.f32 %v497, %v521
    %v537 = vadd.f32 %v498, %v521
    %v538 = vadd.f32 %v499, %v521
    %v539 = vadd.f32 %v500, %v521
    %v540 = vadd.f32 %v501, %v521
    %v541 = vadd.f32 %v502, %v521
    %v542 = vadd.f32 %v503, %v521
    %v543 = vadd.f32 %v504, %v521
    %v544 = vadd.f32 %v505, %v521
    %v545 = vadd.f32 %v506, %v521
    %v546 = vadd.f32 %v507, %v521
    %v547 = vadd.f32 %v508, %v521
    %v548 = vadd.f32 %v509, %v521
    %v549 = vadd.f32 %v510, %v521
    %v550 = vadd.f32 %v511, %v521
    %v551 = vadd.f32 %v512, %v521
    %v552 = vadd.f32 %v513, %v521
    %v553 = vadd.f32 %v514, %v521
    %v554 = vadd.f32 %v515, %v521
    %555 = vst [vmem:[#allocation5] sm:$0xff] %v523
    %556 = vst [vmem:[#allocation5 + $0x8] sm:$0xff] %v524
    %557 = vst [vmem:[#allocation5 + $0x10] sm:$0xff] %v525
    %558 = vst [vmem:[#allocation5 + $0x18] sm:$0xff] %v526
    %559 = vst [vmem:[#allocation5 + $0x20] sm:$0xff] %v527
    %560 = vst [vmem:[#allocation5 + $0x28] sm:$0xff] %v528
    %561 = vst [vmem:[#allocation5 + $0x30] sm:$0xff] %v529
    %562 = vst [vmem:[#allocation5 + $0x38] sm:$0xff] %v530
    %563 = vst [vmem:[#allocation5 + $0x40] sm:$0xff] %v531
    %564 = vst [vmem:[#allocation5 + $0x48] sm:$0xff] %v532
    %565 = vst [vmem:[#allocation5 + $0x50] sm:$0xff] %v533
    %566 = vst [vmem:[#allocation5 + $0x58] sm:$0xff] %v534
    %567 = vst [vmem:[#allocation5 + $0x60] sm:$0xff] %v535
    %568 = vst [vmem:[#allocation5 + $0x68] sm:$0xff] %v536
    %569 = vst [vmem:[#allocation5 + $0x70] sm:$0xff] %v537
    %570 = vst [vmem:[#allocation5 + $0x78] sm:$0xff] %v538
    %571 = vst [vmem:[#allocation5 + $0x80] sm:$0xff] %v539
    %572 = vst [vmem:[#allocation5 + $0x88] sm:$0xff] %v540
    %573 = vst [vmem:[#allocation5 + $0x90] sm:$0xff] %v541
    %574 = vst [vmem:[#allocation5 + $0x98] sm:$0xff] %v542
    %575 = vst [vmem:[#allocation5 + $0xa0] sm:$0xff] %v543
    %576 = vst [vmem:[#allocation5 + $0xa8] sm:$0xff] %v544
    %577 = vst [vmem:[#allocation5 + $0xb0] sm:$0xff] %v545
    %578 = vst [vmem:[#allocation5 + $0xb8] sm:$0xff] %v546
    %579 = vst [vmem:[#allocation5 + $0xc0] sm:$0xff] %v547
    %580 = vst [vmem:[#allocation5 + $0xc8] sm:$0xff] %v548
    %581 = vst [vmem:[#allocation5 + $0xd0] sm:$0xff] %v549
    %582 = vst [vmem:[#allocation5 + $0xd8] sm:$0xff] %v550
    %583 = vst [vmem:[#allocation5 + $0xe0] sm:$0xff] %v551
    %584 = vst [vmem:[#allocation5 + $0xe8] sm:$0xff] %v552
    %585 = vst [vmem:[#allocation5 + $0xf0] sm:$0xff] %v553
    %586 = vst [vmem:[#allocation5 + $0xf8] sm:$0xff] %v554
    // Predicated region
    $region18: #{tpu_custom_call.1} parent=1 // pred_check
      _
    $region19: #{tpu_custom_call.1} parent=1 // pred_check_branch
      %588 = sbr.rel (0) target = $region21
    $region20: #{tpu_custom_call.1} parent=1 // pred_region
      %s590 = ssub.s32 4096, 4096
      %591 = vsyncadd [#allocation4], %s590
      %s592 = sshll.u32 [#allocation5], 4
      %s593 = int_to_ptr.vmem [resolvable:$true] %s592
      %598 = dma.vmem_to_hbm [thread:$0]  %s593, 4096, %s3, [#allocation4], 128, 128, 8
    $region21: #{tpu_custom_call.1} parent=1 // pred_fallthru
      _
    // Predicated region
    $region22: #{tpu_custom_call.1} parent=1 // pred_check
      _
    $region23: #{tpu_custom_call.1} parent=1 // pred_check_branch
      %600 = sbr.rel (0) target = $region25
    $region24: #{tpu_custom_call.1} parent=1 // pred_region
      %601 = dma.done [#allocation4], 4096
    $region25: #{tpu_custom_call.1} parent=1 // pred_fallthru
      _
    %602 = vsyncpa [#allocation3], 1
    %603 = vsyncpa [#allocation4], 1

</llo_original>
